<compile_context>
chip_gen: v6e
topology: v6e:2x2x1
jax: 0.10.0
libtpu: 0.0.40
codegen_flags: <defaults>
</compile_context>

<pallas_src>
import functools

import jax
import jax.numpy as jnp
from jax.experimental import pallas as pl
from jax.experimental.pallas import tpu as pltpu

BN_EPS = 1e-5
LANE = 128      # pad every feature dim to a multiple of the 128-lane vreg width
SUBLANE = 8     # pad the batch/row dim to a multiple of the 8-sublane height


def _round_up(x, m):
    return ((x + m - 1) // m) * m


# ---------------------------------------------------------------------------
# Portable in-kernel PRNG: lowbias32 hash of a (row, col) counter mixed with
# (runtime seed, static per-layer salt).  Uses only jnp/lax integer ops, so it
# lowers both on the TPU Mosaic backend and in interpret mode.
# ---------------------------------------------------------------------------
def _keep_mask(seed_i32, layer_salt, shape, dropout_p):
    r = jax.lax.broadcasted_iota(jnp.int32, shape, 0)
    c = jax.lax.broadcasted_iota(jnp.int32, shape, 1)
    x = (r * jnp.int32(shape[1]) + c).astype(jnp.uint32)
    x = x ^ (seed_i32.astype(jnp.uint32) * jnp.uint32(0x9E3779B9)
             + jnp.uint32(layer_salt & 0xFFFFFFFF))
    # lowbias32 mixer
    x = x ^ (x >> 16)
    x = x * jnp.uint32(0x7FEB352D)
    x = x ^ (x >> 15)
    x = x * jnp.uint32(0x846CA68B)
    x = x ^ (x >> 16)
    bits = (x >> 1).astype(jnp.int32)                      # 31 uniform bits >= 0
    thresh = min(int(dropout_p * (2.0 ** 31)), 2 ** 31 - 1)  # clamp p~1.0 wrap
    return bits >= jnp.int32(thresh)                       # P(keep) ~= 1 - p


# ---------------------------------------------------------------------------
# Fused kernel: all layers in one body; activations stay in VMEM / vregs.
# refs layout: [w0, b0, gamma0, beta0, ..., w_last, b_last, o_ref]
# ---------------------------------------------------------------------------
def _mlp_fused_kernel(seed_ref, x_ref, *refs,
                      n_hidden, dropout_p, training, n_real):
    o_ref = refs[-1]
    n_pad = x_ref.shape[0]
    inv_n = 1.0 / float(n_real)

    h = x_ref[...]                                         # [N_pad, C_pad] f32

    if n_pad != n_real:                                    # static branch
        row_ids = jax.lax.broadcasted_iota(jnp.int32, (n_pad, 1), 0)
        row_mask = (row_ids < n_real).astype(jnp.float32)
    else:
        row_mask = None

    for i in range(n_hidden):
        w_ref, b_ref, g_ref, beta_ref = refs[4 * i: 4 * i + 4]

        # Linear: bf16 MXU matmul, f32 accumulation.
        z = jnp.dot(h.astype(jnp.bfloat16), w_ref[...],
                    preferred_element_type=jnp.float32) + b_ref[...]

        # BatchNorm1d (training mode): biased batch stats via sum / sum-of-sq,
        # masked so zero-padded rows do not contribute.
        zm = z if row_mask is None else z * row_mask
        mean = jnp.sum(zm, axis=0, keepdims=True) * inv_n
        var = jnp.maximum(
            jnp.sum(zm * zm, axis=0, keepdims=True) * inv_n - mean * mean, 0.0)
        z = (z - mean) * jax.lax.rsqrt(var + BN_EPS)
        z = z * g_ref[...] + beta_ref[...]

        # ReLU
        z = jnp.maximum(z, 0.0)

        # Dropout (inverted), training mode only (static branch).
        if training and dropout_p > 0.0:
            salt = (i + 1) * 0x85EBCA6B
            keep = _keep_mask(seed_ref[0], salt, z.shape, dropout_p)
            z = jnp.where(keep, z * (1.0 / (1.0 - dropout_p)), 0.0)

        h = z

    # Final Linear (no BN / ReLU / dropout).
    w_ref, b_ref = refs[4 * n_hidden], refs[4 * n_hidden + 1]
    o_ref[...] = jnp.dot(h.astype(jnp.bfloat16), w_ref[...],
                         preferred_element_type=jnp.float32) + b_ref[...]


# ---------------------------------------------------------------------------
# Parameter init (PyTorch-style) and one-time packing (transpose / pad / bf16).
# ---------------------------------------------------------------------------
def init_mlp_params(key, in_channels, hidden_channels, out_channels):
    dims = [in_channels] + list(hidden_channels) + [out_channels]
    params = {"lins": [], "bns": []}
    for i in range(len(dims) - 1):
        fan_in, fan_out = dims[i], dims[i + 1]
        key, kw, kb = jax.random.split(key, 3)
        bound = 1.0 / (fan_in ** 0.5)
        w = jax.random.uniform(kw, (fan_out, fan_in), jnp.float32, -bound, bound)
        b = jax.random.uniform(kb, (fan_out,), jnp.float32, -bound, bound)
        params["lins"].append((w, b))
        if i < len(dims) - 2:
            params["bns"].append((jnp.ones((fan_out,), jnp.float32),
                                  jnp.zeros((fan_out,), jnp.float32)))
    return params


def pad_params_for_kernel(params):
    """Done ONCE: transpose weights to [Cin, Cout], zero-pad feature dims to
    multiples of 128 lanes, cast weights to bf16 (MXU-native)."""
    n_hidden = len(params["bns"])
    layers = []
    for i, (w, b) in enumerate(params["lins"]):
        c_out, c_in = w.shape
        ci_p, co_p = _round_up(c_in, LANE), _round_up(c_out, LANE)
        wt = jnp.zeros((ci_p, co_p), jnp.float32).at[:c_in, :c_out].set(w.T)
        bp = jnp.zeros((1, co_p), jnp.float32).at[0, :c_out].set(b)
        layer = [wt.astype(jnp.bfloat16), bp]
        if i < n_hidden:
            gamma, beta = params["bns"][i]
            gp = jnp.zeros((1, co_p), jnp.float32).at[0, :c_out].set(gamma)
            btp = jnp.zeros((1, co_p), jnp.float32).at[0, :c_out].set(beta)
            layer += [gp, btp]
        layers.append(layer)
    return {"layers": layers,
            "out_channels": int(params["lins"][-1][0].shape[0])}


# ---------------------------------------------------------------------------
# Forward wrapper: one pallas_call for the entire MLP.
# ---------------------------------------------------------------------------
def mlp_forward(packed, x, *, dropout, training, seed=0):
    layers = packed["layers"]
    out_channels = packed["out_channels"]
    n_hidden = len(layers) - 1

    n, c_in = x.shape
    n_pad = _round_up(n, SUBLANE)
    c_in_pad = layers[0][0].shape[0]
    c_last_pad = layers[-1][0].shape[1]

    x_pad = jnp.zeros((n_pad, c_in_pad), jnp.float32).at[:n, :c_in].set(x)

    vmem = pl.BlockSpec(memory_space=pltpu.MemorySpace.VMEM)
    smem = pl.BlockSpec(memory_space=pltpu.MemorySpace.SMEM)

    flat_inputs = []
    in_specs = [smem, vmem]                 # seed, x
    for layer in layers:
        for arr in layer:
            flat_inputs.append(arr)
            in_specs.append(vmem)

    kernel = functools.partial(
        _mlp_fused_kernel,
        n_hidden=n_hidden,
        dropout_p=float(dropout),
        training=bool(training),
        n_real=int(n),
    )

    out_pad = pl.pallas_call(
        kernel,
        out_shape=jax.ShapeDtypeStruct((n_pad, c_last_pad), jnp.float32),
        in_specs=in_specs,
        out_specs=vmem,
    )(jnp.asarray([seed], dtype=jnp.int32), x_pad, *flat_inputs)

    return out_pad[:n, :out_channels]


# ---------------------------------------------------------------------------
if __name__ == "__main__":
    key = jax.random.PRNGKey(0)

    # Small shapes consistent with the module (2-D [N, C] input).
    N = 64
    in_channels = 16
    hidden_channels = [32, 32]
    out_channels = 8
    dropout = 0.5

    key, kx, kp = jax.random.split(key, 3)
    x = jax.random.normal(kx, (N, in_channels), jnp.float32)
    params = init_mlp_params(kp, in_channels, hidden_channels, out_channels)
    packed = pad_params_for_kernel(params)

    out = mlp_forward(packed, x, dropout=dropout, training=True, seed=1234)
    out = jax.block_until_ready(out)

    assert out.shape == (N, out_channels) and out.dtype == jnp.float32
    assert bool(jnp.all(jnp.isfinite(out)))
    print("KERNEL_OK")
</pallas_src>

<mosaic_0001>
module attributes {stable_mosaic.version = 11 : i64} {
  func.func @_mlp_fused_kernel(%arg0: memref<1xi32, #tpu.memory_space<smem>>, %arg1: memref<64x128xf32, #tpu.memory_space<vmem>>, %arg2: memref<128x128xbf16, #tpu.memory_space<vmem>>, %arg3: memref<1x128xf32, #tpu.memory_space<vmem>>, %arg4: memref<1x128xf32, #tpu.memory_space<vmem>>, %arg5: memref<1x128xf32, #tpu.memory_space<vmem>>, %arg6: memref<128x128xbf16, #tpu.memory_space<vmem>>, %arg7: memref<1x128xf32, #tpu.memory_space<vmem>>, %arg8: memref<1x128xf32, #tpu.memory_space<vmem>>, %arg9: memref<1x128xf32, #tpu.memory_space<vmem>>, %arg10: memref<128x128xbf16, #tpu.memory_space<vmem>>, %arg11: memref<1x128xf32, #tpu.memory_space<vmem>>, %arg12: memref<64x128xf32, #tpu.memory_space<vmem>>) attributes {dimension_semantics = [], scalar_prefetch = 0 : i64, scratch_operands = 0 : i64, tpu.core_type = #tpu.core_type<tc>} {
    %c0 = arith.constant 0 : index
    %c0_0 = arith.constant 0 : index
    %0 = vector.load %arg1[%c0, %c0_0] : memref<64x128xf32, #tpu.memory_space<vmem>>, vector<64x128xf32>
    %1 = arith.truncf %0 : vector<64x128xf32> to vector<64x128xbf16>
    %c0_1 = arith.constant 0 : index
    %c0_2 = arith.constant 0 : index
    %2 = vector.load %arg2[%c0_1, %c0_2] : memref<128x128xbf16, #tpu.memory_space<vmem>>, vector<128x128xbf16>
    %cst = arith.constant dense<0.000000e+00> : vector<64x128xf32>
    %3 = tpu.matmul %1, %2, %cst {dimension_numbers = #tpu.dot_dimension_numbers<[1], [0], [0], [1], [0, 0, 1, 1], [], []>} : vector<64x128xbf16>, vector<128x128xbf16>, vector<64x128xf32> -> vector<64x128xf32>
    %c0_3 = arith.constant 0 : index
    %c0_4 = arith.constant 0 : index
    %4 = vector.load %arg3[%c0_3, %c0_4] : memref<1x128xf32, #tpu.memory_space<vmem>>, vector<1x128xf32>
    %5 = vector.broadcast %4 : vector<1x128xf32> to vector<64x128xf32>
    %6 = arith.addf %3, %5 : vector<64x128xf32>
    %cst_5 = arith.constant dense<0.000000e+00> : vector<128xf32>
    %7 = vector.multi_reduction <add>, %6, %cst_5 [0] : vector<64x128xf32> to vector<128xf32>
    %8 = vector.shape_cast %7 : vector<128xf32> to vector<1x128xf32>
    %cst_6 = arith.constant 1.562500e-02 : f32
    %9 = vector.broadcast %cst_6 : f32 to vector<1x128xf32>
    %10 = arith.mulf %8, %9 : vector<1x128xf32>
    %11 = arith.mulf %6, %6 : vector<64x128xf32>
    %cst_7 = arith.constant dense<0.000000e+00> : vector<128xf32>
    %12 = vector.multi_reduction <add>, %11, %cst_7 [0] : vector<64x128xf32> to vector<128xf32>
    %13 = vector.shape_cast %12 : vector<128xf32> to vector<1x128xf32>
    %cst_8 = arith.constant 1.562500e-02 : f32
    %14 = vector.broadcast %cst_8 : f32 to vector<1x128xf32>
    %15 = arith.mulf %13, %14 : vector<1x128xf32>
    %16 = arith.mulf %10, %10 : vector<1x128xf32>
    %17 = arith.subf %15, %16 : vector<1x128xf32>
    %cst_9 = arith.constant 0.000000e+00 : f32
    %18 = vector.broadcast %cst_9 : f32 to vector<1x128xf32>
    %19 = arith.maximumf %17, %18 : vector<1x128xf32>
    %20 = vector.broadcast %10 : vector<1x128xf32> to vector<64x128xf32>
    %21 = arith.subf %6, %20 : vector<64x128xf32>
    %cst_10 = arith.constant 9.99999974E-6 : f32
    %22 = vector.broadcast %cst_10 : f32 to vector<1x128xf32>
    %23 = arith.addf %19, %22 : vector<1x128xf32>
    %24 = math.rsqrt %23 : vector<1x128xf32>
    %25 = vector.broadcast %24 : vector<1x128xf32> to vector<64x128xf32>
    %26 = arith.mulf %21, %25 : vector<64x128xf32>
    %c0_11 = arith.constant 0 : index
    %c0_12 = arith.constant 0 : index
    %27 = vector.load %arg4[%c0_11, %c0_12] : memref<1x128xf32, #tpu.memory_space<vmem>>, vector<1x128xf32>
    %28 = vector.broadcast %27 : vector<1x128xf32> to vector<64x128xf32>
    %29 = arith.mulf %26, %28 : vector<64x128xf32>
    %c0_13 = arith.constant 0 : index
    %c0_14 = arith.constant 0 : index
    %30 = vector.load %arg5[%c0_13, %c0_14] : memref<1x128xf32, #tpu.memory_space<vmem>>, vector<1x128xf32>
    %31 = vector.broadcast %30 : vector<1x128xf32> to vector<64x128xf32>
    %32 = arith.addf %29, %31 : vector<64x128xf32>
    %cst_15 = arith.constant 0.000000e+00 : f32
    %33 = vector.broadcast %cst_15 : f32 to vector<64x128xf32>
    %34 = arith.maximumf %32, %33 : vector<64x128xf32>
    %c0_16 = arith.constant 0 : index
    %35 = memref.load %arg0[%c0_16] : memref<1xi32, #tpu.memory_space<smem>>
    %36 = tpu.iota {dimensions = array<i32: 0>} : vector<64x128xi32>
    %37 = tpu.iota {dimensions = array<i32: 1>} : vector<64x128xi32>
    %c128_i32 = arith.constant 128 : i32
    %38 = vector.broadcast %c128_i32 : i32 to vector<64x128xi32>
    %39 = arith.muli %36, %38 : vector<64x128xi32>
    %40 = arith.addi %39, %37 : vector<64x128xi32>
    %c-1640531527_i32 = arith.constant -1640531527 : i32
    %41 = arith.muli %35, %c-1640531527_i32 : i32
    %c-2048144789_i32 = arith.constant -2048144789 : i32
    %42 = arith.addi %41, %c-2048144789_i32 : i32
    %43 = vector.broadcast %42 : i32 to vector<64x128xi32>
    %44 = arith.xori %40, %43 : vector<64x128xi32>
    %c16_i32 = arith.constant 16 : i32
    %45 = vector.broadcast %c16_i32 : i32 to vector<64x128xi32>
    %46 = arith.shrui %44, %45 : vector<64x128xi32>
    %47 = arith.xori %44, %46 : vector<64x128xi32>
    %c2146121005_i32 = arith.constant 2146121005 : i32
    %48 = vector.broadcast %c2146121005_i32 : i32 to vector<64x128xi32>
    %49 = arith.muli %47, %48 : vector<64x128xi32>
    %c15_i32 = arith.constant 15 : i32
    %50 = vector.broadcast %c15_i32 : i32 to vector<64x128xi32>
    %51 = arith.shrui %49, %50 : vector<64x128xi32>
    %52 = arith.xori %49, %51 : vector<64x128xi32>
    %c-2073254261_i32 = arith.constant -2073254261 : i32
    %53 = vector.broadcast %c-2073254261_i32 : i32 to vector<64x128xi32>
    %54 = arith.muli %52, %53 : vector<64x128xi32>
    %c16_i32_17 = arith.constant 16 : i32
    %55 = vector.broadcast %c16_i32_17 : i32 to vector<64x128xi32>
    %56 = arith.shrui %54, %55 : vector<64x128xi32>
    %57 = arith.xori %54, %56 : vector<64x128xi32>
    %c1_i32 = arith.constant 1 : i32
    %58 = vector.broadcast %c1_i32 : i32 to vector<64x128xi32>
    %59 = arith.shrui %57, %58 : vector<64x128xi32>
    %c1073741824_i32 = arith.constant 1073741824 : i32
    %60 = vector.broadcast %c1073741824_i32 : i32 to vector<64x128xi32>
    %61 = arith.cmpi sge, %59, %60 : vector<64x128xi32>
    %cst_18 = arith.constant 2.000000e+00 : f32
    %62 = vector.broadcast %cst_18 : f32 to vector<64x128xf32>
    %63 = arith.mulf %34, %62 : vector<64x128xf32>
    %cst_19 = arith.constant 0.000000e+00 : f32
    %64 = vector.broadcast %cst_19 : f32 to vector<64x128xf32>
    %65 = arith.select %61, %63, %64 : vector<64x128xi1>, vector<64x128xf32>
    %66 = arith.truncf %65 : vector<64x128xf32> to vector<64x128xbf16>
    %c0_20 = arith.constant 0 : index
    %c0_21 = arith.constant 0 : index
    %67 = vector.load %arg6[%c0_20, %c0_21] : memref<128x128xbf16, #tpu.memory_space<vmem>>, vector<128x128xbf16>
    %cst_22 = arith.constant dense<0.000000e+00> : vector<64x128xf32>
    %68 = tpu.matmul %66, %67, %cst_22 {dimension_numbers = #tpu.dot_dimension_numbers<[1], [0], [0], [1], [0, 0, 1, 1], [], []>} : vector<64x128xbf16>, vector<128x128xbf16>, vector<64x128xf32> -> vector<64x128xf32>
    %c0_23 = arith.constant 0 : index
    %c0_24 = arith.constant 0 : index
    %69 = vector.load %arg7[%c0_23, %c0_24] : memref<1x128xf32, #tpu.memory_space<vmem>>, vector<1x128xf32>
    %70 = vector.broadcast %69 : vector<1x128xf32> to vector<64x128xf32>
    %71 = arith.addf %68, %70 : vector<64x128xf32>
    %cst_25 = arith.constant dense<0.000000e+00> : vector<128xf32>
    %72 = vector.multi_reduction <add>, %71, %cst_25 [0] : vector<64x128xf32> to vector<128xf32>
    %73 = vector.shape_cast %72 : vector<128xf32> to vector<1x128xf32>
    %cst_26 = arith.constant 1.562500e-02 : f32
    %74 = vector.broadcast %cst_26 : f32 to vector<1x128xf32>
    %75 = arith.mulf %73, %74 : vector<1x128xf32>
    %76 = arith.mulf %71, %71 : vector<64x128xf32>
    %cst_27 = arith.constant dense<0.000000e+00> : vector<128xf32>
    %77 = vector.multi_reduction <add>, %76, %cst_27 [0] : vector<64x128xf32> to vector<128xf32>
    %78 = vector.shape_cast %77 : vector<128xf32> to vector<1x128xf32>
    %cst_28 = arith.constant 1.562500e-02 : f32
    %79 = vector.broadcast %cst_28 : f32 to vector<1x128xf32>
    %80 = arith.mulf %78, %79 : vector<1x128xf32>
    %81 = arith.mulf %75, %75 : vector<1x128xf32>
    %82 = arith.subf %80, %81 : vector<1x128xf32>
    %cst_29 = arith.constant 0.000000e+00 : f32
    %83 = vector.broadcast %cst_29 : f32 to vector<1x128xf32>
    %84 = arith.maximumf %82, %83 : vector<1x128xf32>
    %85 = vector.broadcast %75 : vector<1x128xf32> to vector<64x128xf32>
    %86 = arith.subf %71, %85 : vector<64x128xf32>
    %cst_30 = arith.constant 9.99999974E-6 : f32
    %87 = vector.broadcast %cst_30 : f32 to vector<1x128xf32>
    %88 = arith.addf %84, %87 : vector<1x128xf32>
    %89 = math.rsqrt %88 : vector<1x128xf32>
    %90 = vector.broadcast %89 : vector<1x128xf32> to vector<64x128xf32>
    %91 = arith.mulf %86, %90 : vector<64x128xf32>
    %c0_31 = arith.constant 0 : index
    %c0_32 = arith.constant 0 : index
    %92 = vector.load %arg8[%c0_31, %c0_32] : memref<1x128xf32, #tpu.memory_space<vmem>>, vector<1x128xf32>
    %93 = vector.broadcast %92 : vector<1x128xf32> to vector<64x128xf32>
    %94 = arith.mulf %91, %93 : vector<64x128xf32>
    %c0_33 = arith.constant 0 : index
    %c0_34 = arith.constant 0 : index
    %95 = vector.load %arg9[%c0_33, %c0_34] : memref<1x128xf32, #tpu.memory_space<vmem>>, vector<1x128xf32>
    %96 = vector.broadcast %95 : vector<1x128xf32> to vector<64x128xf32>
    %97 = arith.addf %94, %96 : vector<64x128xf32>
    %cst_35 = arith.constant 0.000000e+00 : f32
    %98 = vector.broadcast %cst_35 : f32 to vector<64x128xf32>
    %99 = arith.maximumf %97, %98 : vector<64x128xf32>
    %c0_36 = arith.constant 0 : index
    %100 = memref.load %arg0[%c0_36] : memref<1xi32, #tpu.memory_space<smem>>
    %101 = tpu.iota {dimensions = array<i32: 0>} : vector<64x128xi32>
    %102 = tpu.iota {dimensions = array<i32: 1>} : vector<64x128xi32>
    %c128_i32_37 = arith.constant 128 : i32
    %103 = vector.broadcast %c128_i32_37 : i32 to vector<64x128xi32>
    %104 = arith.muli %101, %103 : vector<64x128xi32>
    %105 = arith.addi %104, %102 : vector<64x128xi32>
    %c-1640531527_i32_38 = arith.constant -1640531527 : i32
    %106 = arith.muli %100, %c-1640531527_i32_38 : i32
    %c198677718_i32 = arith.constant 198677718 : i32
    %107 = arith.addi %106, %c198677718_i32 : i32
    %108 = vector.broadcast %107 : i32 to vector<64x128xi32>
    %109 = arith.xori %105, %108 : vector<64x128xi32>
    %c16_i32_39 = arith.constant 16 : i32
    %110 = vector.broadcast %c16_i32_39 : i32 to vector<64x128xi32>
    %111 = arith.shrui %109, %110 : vector<64x128xi32>
    %112 = arith.xori %109, %111 : vector<64x128xi32>
    %c2146121005_i32_40 = arith.constant 2146121005 : i32
    %113 = vector.broadcast %c2146121005_i32_40 : i32 to vector<64x128xi32>
    %114 = arith.muli %112, %113 : vector<64x128xi32>
    %c15_i32_41 = arith.constant 15 : i32
    %115 = vector.broadcast %c15_i32_41 : i32 to vector<64x128xi32>
    %116 = arith.shrui %114, %115 : vector<64x128xi32>
    %117 = arith.xori %114, %116 : vector<64x128xi32>
    %c-2073254261_i32_42 = arith.constant -2073254261 : i32
    %118 = vector.broadcast %c-2073254261_i32_42 : i32 to vector<64x128xi32>
    %119 = arith.muli %117, %118 : vector<64x128xi32>
    %c16_i32_43 = arith.constant 16 : i32
    %120 = vector.broadcast %c16_i32_43 : i32 to vector<64x128xi32>
    %121 = arith.shrui %119, %120 : vector<64x128xi32>
    %122 = arith.xori %119, %121 : vector<64x128xi32>
    %c1_i32_44 = arith.constant 1 : i32
    %123 = vector.broadcast %c1_i32_44 : i32 to vector<64x128xi32>
    %124 = arith.shrui %122, %123 : vector<64x128xi32>
    %c1073741824_i32_45 = arith.constant 1073741824 : i32
    %125 = vector.broadcast %c1073741824_i32_45 : i32 to vector<64x128xi32>
    %126 = arith.cmpi sge, %124, %125 : vector<64x128xi32>
    %cst_46 = arith.constant 2.000000e+00 : f32
    %127 = vector.broadcast %cst_46 : f32 to vector<64x128xf32>
    %128 = arith.mulf %99, %127 : vector<64x128xf32>
    %cst_47 = arith.constant 0.000000e+00 : f32
    %129 = vector.broadcast %cst_47 : f32 to vector<64x128xf32>
    %130 = arith.select %126, %128, %129 : vector<64x128xi1>, vector<64x128xf32>
    %131 = arith.truncf %130 : vector<64x128xf32> to vector<64x128xbf16>
    %c0_48 = arith.constant 0 : index
    %c0_49 = arith.constant 0 : index
    %132 = vector.load %arg10[%c0_48, %c0_49] : memref<128x128xbf16, #tpu.memory_space<vmem>>, vector<128x128xbf16>
    %cst_50 = arith.constant dense<0.000000e+00> : vector<64x128xf32>
    %133 = tpu.matmul %131, %132, %cst_50 {dimension_numbers = #tpu.dot_dimension_numbers<[1], [0], [0], [1], [0, 0, 1, 1], [], []>} : vector<64x128xbf16>, vector<128x128xbf16>, vector<64x128xf32> -> vector<64x128xf32>
    %c0_51 = arith.constant 0 : index
    %c0_52 = arith.constant 0 : index
    %134 = vector.load %arg11[%c0_51, %c0_52] : memref<1x128xf32, #tpu.memory_space<vmem>>, vector<1x128xf32>
    %135 = vector.broadcast %134 : vector<1x128xf32> to vector<64x128xf32>
    %136 = arith.addf %133, %135 : vector<64x128xf32>
    %c0_53 = arith.constant 0 : index
    %c0_54 = arith.constant 0 : index
    %137 = vector.load %arg12[%c0_53, %c0_54] : memref<64x128xf32, #tpu.memory_space<vmem>>, vector<64x128xf32>
    tpu.vector_store %arg12[%c0_53, %c0_54], %136 {strides = array<i32>} : memref<64x128xf32, #tpu.memory_space<vmem>>, vector<64x128xf32>,
    return
  }
}

</mosaic_0001>

<llo_original>
// kernel: tpu_custom_call.1
$region0: #{tpu_custom_call.1}
  #allocation0 [shape = 'u32[]', space=smem, size = 0x4, offset = 0x4, fixed_abs, tag = 'smem constant byte address 0x4 - core index']
  #allocation1 [shape = 'u32[144,128]{1,0:T(1,128)}', space=vmem, size = 0x12000, scoped, tag = 'internal scratch']
  #allocation2 [shape = 's32[1]{0:T(128)S(6)}', space=smem, size = 0x200, scoped, tag = 'scoped memory for tpu_custom_call.1']
  %s0 = inlined_call_operand.<no memory space> [shape: s32[1], index: 0, kind: input, shape index: {}]
  %s1 = inlined_call_operand.hbm [shape: f32[64,128], index: 1, kind: input, shape index: {}]
  %s2 = inlined_call_operand.hbm [shape: bf16[128,128], index: 2, kind: input, shape index: {}]
  %s3 = inlined_call_operand.vmem [shape: f32[1,128], index: 3, kind: input, shape index: {}]
  %s4 = inlined_call_operand.vmem [shape: f32[1,128], index: 4, kind: input, shape index: {}]
  %s5 = inlined_call_operand.vmem [shape: f32[1,128], index: 5, kind: input, shape index: {}]
  %s6 = inlined_call_operand.hbm [shape: bf16[128,128], index: 6, kind: input, shape index: {}]
  %s7 = inlined_call_operand.vmem [shape: f32[1,128], index: 7, kind: input, shape index: {}]
  %s8 = inlined_call_operand.vmem [shape: f32[1,128], index: 8, kind: input, shape index: {}]
  %s9 = inlined_call_operand.vmem [shape: f32[1,128], index: 9, kind: input, shape index: {}]
  %s10 = inlined_call_operand.hbm [shape: bf16[128,128], index: 10, kind: input, shape index: {}]
  %s11 = inlined_call_operand.vmem [shape: f32[1,128], index: 11, kind: input, shape index: {}]
  %s12 = inlined_call_operand.hbm [shape: f32[64,128], index: 12, kind: output, shape index: {}]
  %s13 = sld [smem:[#allocation0]]
  $region74: #{tpu_custom_call.1} parent=0
    _
  %s15 = ssub.s32 1, %s13
  %s16 = scalar_select 0, %s15, %s13
  %17 = sst [smem:[#allocation2]] %s0
  $region1: #{tpu_custom_call.1} parent=0
    #allocation3 [shape = 'u8[32768]{0}', space=vmem, size = 0x8000, scoped, tag = 'input window, operand 1, single buffered']
    #allocation4 [shape = 's32[1]{0}', space=sflag, size = 0x4, scoped, tag = 'scoped memory for tpu_custom_call.1']
    #allocation5 [shape = 's32[1]{0}', space=sflag, size = 0x4, scoped, tag = 'scoped memory for tpu_custom_call.1']
    #allocation6 [shape = 'u8[32768]{0}', space=vmem, size = 0x8000, scoped, tag = 'input window, operand 2, single buffered']
    #allocation7 [shape = 's32[1]{0}', space=sflag, size = 0x4, scoped, tag = 'scoped memory for tpu_custom_call.1']
    #allocation8 [shape = 'u8[32768]{0}', space=vmem, size = 0x8000, scoped, tag = 'input window, operand 6, single buffered']
    #allocation9 [shape = 'u8[32768]{0}', space=vmem, size = 0x8000, scoped, tag = 'input window, operand 10, single buffered']
    #allocation10 [shape = 's32[1]{0}', space=sflag, size = 0x4, scoped, tag = 'scoped memory for tpu_custom_call.1']
    #allocation11 [shape = 'u8[32768]{0}', space=vmem, size = 0x8000, scoped, tag = 'output window, operand 0, single buffered']
    %18 = vsyncpa [#allocation4], 0
    %19 = vsyncpa [#allocation7], 0
    %20 = vsyncpa [#allocation10], 0
    %21 = vsyncpa [#allocation5], 0
    // Predicated region
    $region2: #{tpu_custom_call.1} parent=1 // pred_check
      _
    $region3: #{tpu_custom_call.1} parent=1 // pred_check_branch
      %23 = sbr.rel (0) target = $region5
    $region4: #{tpu_custom_call.1} parent=1 // pred_region
      _
    $region5: #{tpu_custom_call.1} parent=1 // pred_fallthru
      _
    // Predicated region
    $region6: #{tpu_custom_call.1} parent=1 // pred_check
      _
    $region7: #{tpu_custom_call.1} parent=1 // pred_check_branch
      %25 = sbr.rel (0) target = $region9
    $region8: #{tpu_custom_call.1} parent=1 // pred_region
      %s27 = ssub.s32 1024, 1024
      %28 = vsyncadd [#allocation4], %s27
      %s29 = sshll.u32 [#allocation3], 4
      %s30 = int_to_ptr.vmem [resolvable:$true] %s29
      %35 = dma.hbm_to_vmem [thread:$0]  %s1, 1024, %s30, [#allocation4], 128, 128, 8
    $region9: #{tpu_custom_call.1} parent=1 // pred_fallthru
      _
    // Predicated region
    $region10: #{tpu_custom_call.1} parent=1 // pred_check
      _
    $region11: #{tpu_custom_call.1} parent=1 // pred_check_branch
      %37 = sbr.rel (0) target = $region13
    $region12: #{tpu_custom_call.1} parent=1 // pred_region
      %s39 = ssub.s32 1024, 1024
      %40 = vsyncadd [#allocation7], %s39
      %s41 = sshll.u32 [#allocation6], 4
      %s42 = int_to_ptr.vmem [resolvable:$true] %s41
      %47 = dma.hbm_to_vmem [thread:$0]  %s2, 1024, %s42, [#allocation7], 64, 64, 4
    $region13: #{tpu_custom_call.1} parent=1 // pred_fallthru
      _
    // Predicated region
    $region14: #{tpu_custom_call.1} parent=1 // pred_check
      _
    $region15: #{tpu_custom_call.1} parent=1 // pred_check_branch
      %49 = sbr.rel (0) target = $region17
    $region16: #{tpu_custom_call.1} parent=1 // pred_region
      _
    $region17: #{tpu_custom_call.1} parent=1 // pred_fallthru
      _
    // Predicated region
    $region18: #{tpu_custom_call.1} parent=1 // pred_check
      _
    $region19: #{tpu_custom_call.1} parent=1 // pred_check_branch
      %51 = sbr.rel (0) target = $region21
    $region20: #{tpu_custom_call.1} parent=1 // pred_region
      _
    $region21: #{tpu_custom_call.1} parent=1 // pred_fallthru
      _
    // Predicated region
    $region22: #{tpu_custom_call.1} parent=1 // pred_check
      _
    $region23: #{tpu_custom_call.1} parent=1 // pred_check_branch
      %53 = sbr.rel (0) target = $region25
    $region24: #{tpu_custom_call.1} parent=1 // pred_region
      _
    $region25: #{tpu_custom_call.1} parent=1 // pred_fallthru
      _
    // Predicated region
    $region26: #{tpu_custom_call.1} parent=1 // pred_check
      _
    $region27: #{tpu_custom_call.1} parent=1 // pred_check_branch
      %55 = sbr.rel (0) target = $region29
    $region28: #{tpu_custom_call.1} parent=1 // pred_region
      %s57 = ssub.s32 1024, 1024
      %58 = vsyncadd [#allocation7], %s57
      %s59 = sshll.u32 [#allocation8], 4
      %s60 = int_to_ptr.vmem [resolvable:$true] %s59
      %65 = dma.hbm_to_vmem [thread:$0]  %s6, 1024, %s60, [#allocation7], 64, 64, 4
    $region29: #{tpu_custom_call.1} parent=1 // pred_fallthru
      _
    // Predicated region
    $region30: #{tpu_custom_call.1} parent=1 // pred_check
      _
    $region31: #{tpu_custom_call.1} parent=1 // pred_check_branch
      %67 = sbr.rel (0) target = $region33
    $region32: #{tpu_custom_call.1} parent=1 // pred_region
      _
    $region33: #{tpu_custom_call.1} parent=1 // pred_fallthru
      _
    // Predicated region
    $region34: #{tpu_custom_call.1} parent=1 // pred_check
      _
    $region35: #{tpu_custom_call.1} parent=1 // pred_check_branch
      %69 = sbr.rel (0) target = $region37
    $region36: #{tpu_custom_call.1} parent=1 // pred_region
      _
    $region37: #{tpu_custom_call.1} parent=1 // pred_fallthru
      _
    // Predicated region
    $region38: #{tpu_custom_call.1} parent=1 // pred_check
      _
    $region39: #{tpu_custom_call.1} parent=1 // pred_check_branch
      %71 = sbr.rel (0) target = $region41
    $region40: #{tpu_custom_call.1} parent=1 // pred_region
      _
    $region41: #{tpu_custom_call.1} parent=1 // pred_fallthru
      _
    // Predicated region
    $region42: #{tpu_custom_call.1} parent=1 // pred_check
      _
    $region43: #{tpu_custom_call.1} parent=1 // pred_check_branch
      %73 = sbr.rel (0) target = $region45
    $region44: #{tpu_custom_call.1} parent=1 // pred_region
      %s75 = ssub.s32 1024, 1024
      %76 = vsyncadd [#allocation10], %s75
      %s77 = sshll.u32 [#allocation9], 4
      %s78 = int_to_ptr.vmem [resolvable:$true] %s77
      %83 = dma.hbm_to_vmem [thread:$0]  %s10, 1024, %s78, [#allocation10], 64, 64, 4
    $region45: #{tpu_custom_call.1} parent=1 // pred_fallthru
      _
    // Predicated region
    $region46: #{tpu_custom_call.1} parent=1 // pred_check
      _
    $region47: #{tpu_custom_call.1} parent=1 // pred_check_branch
      %85 = sbr.rel (0) target = $region49
    $region48: #{tpu_custom_call.1} parent=1 // pred_region
      _
    $region49: #{tpu_custom_call.1} parent=1 // pred_fallthru
      _
    // Predicated region
    $region50: #{tpu_custom_call.1} parent=1 // pred_check
      _
    $region51: #{tpu_custom_call.1} parent=1 // pred_check_branch
      %87 = sbr.rel (0) target = $region53
    $region52: #{tpu_custom_call.1} parent=1 // pred_region
      %88 = dma.done [#allocation4], 1024
    $region53: #{tpu_custom_call.1} parent=1 // pred_fallthru
      _
    // Predicated region
    $region54: #{tpu_custom_call.1} parent=1 // pred_check
      _
    $region55: #{tpu_custom_call.1} parent=1 // pred_check_branch
      %90 = sbr.rel (0) target = $region57
    $region56: #{tpu_custom_call.1} parent=1 // pred_region
      %91 = dma.done [#allocation7], 1024
    $region57: #{tpu_custom_call.1} parent=1 // pred_fallthru
      _
    // Predicated region
    $region58: #{tpu_custom_call.1} parent=1 // pred_check
      _
    $region59: #{tpu_custom_call.1} parent=1 // pred_check_branch
      %93 = sbr.rel (0) target = $region61
    $region60: #{tpu_custom_call.1} parent=1 // pred_region
      %94 = dma.done [#allocation7], 1024
    $region61: #{tpu_custom_call.1} parent=1 // pred_fallthru
      _
    // Predicated region
    $region62: #{tpu_custom_call.1} parent=1 // pred_check
      _
    $region63: #{tpu_custom_call.1} parent=1 // pred_check_branch
      %96 = sbr.rel (0) target = $region65
    $region64: #{tpu_custom_call.1} parent=1 // pred_region
      %97 = dma.done [#allocation10], 1024
    $region65: #{tpu_custom_call.1} parent=1 // pred_fallthru
      _
    %v99 = vld [vmem:[#allocation3] sm:$0xff]
    %v100 = vld [vmem:[#allocation3 + $0x8] sm:$0xff]
    %v101 = vld [vmem:[#allocation3 + $0x10] sm:$0xff]
    %v102 = vld [vmem:[#allocation3 + $0x18] sm:$0xff]
    %v103 = vld [vmem:[#allocation3 + $0x20] sm:$0xff]
    %v104 = vld [vmem:[#allocation3 + $0x28] sm:$0xff]
    %v105 = vld [vmem:[#allocation3 + $0x30] sm:$0xff]
    %v106 = vld [vmem:[#allocation3 + $0x38] sm:$0xff]
    %v107 = vpack.c.bf16 %v100, %v99
    %v108 = vpack.c.bf16 %v102, %v101
    %v109 = vpack.c.bf16 %v104, %v103
    %v110 = vpack.c.bf16 %v106, %v105
    %v111 = vld [vmem:[#allocation6] sm:$0xf]
    %v112 = vld [vmem:[#allocation6 + $0x4] sm:$0xf]
    %v113 = vld [vmem:[#allocation6 + $0x8] sm:$0xf]
    %v114 = vld [vmem:[#allocation6 + $0xc] sm:$0xf]
    %v115 = vld [vmem:[#allocation6 + $0x10] sm:$0xf]
    %v116 = vld [vmem:[#allocation6 + $0x14] sm:$0xf]
    %v117 = vld [vmem:[#allocation6 + $0x18] sm:$0xf]
    %v118 = vld [vmem:[#allocation6 + $0x1c] sm:$0xf]
    %v119 = vld [vmem:[#allocation6 + $0x20] sm:$0xf]
    %v120 = vld [vmem:[#allocation6 + $0x24] sm:$0xf]
    %v121 = vld [vmem:[#allocation6 + $0x28] sm:$0xf]
    %v122 = vld [vmem:[#allocation6 + $0x2c] sm:$0xf]
    %v123 = vld [vmem:[#allocation6 + $0x30] sm:$0xf]
    %v124 = vld [vmem:[#allocation6 + $0x34] sm:$0xf]
    %v125 = vld [vmem:[#allocation6 + $0x38] sm:$0xf]
    %v126 = vld [vmem:[#allocation6 + $0x3c] sm:$0xf]
    %v127 = vld [vmem:[%s3] sm:$0x1]
    %v129 = vlaneseq
    %v130 = vshrl.u32 %v129, 7
    %v131 = vsub.s32 0, %v130
    %v132 = vrot.slane %v127, %v131
    %v150 = vunpack.c.l.b16 %v111
    %v151 = vunpack.c.l.b16 %v112
    %v152 = vunpack.c.l.b16 %v113
    %v153 = vunpack.c.l.b16 %v114
    %v154 = vunpack.c.l.b16 %v115
    %v155 = vunpack.c.l.b16 %v116
    %v156 = vunpack.c.l.b16 %v117
    %v157 = vunpack.c.l.b16 %v118
    %v158 = vunpack.c.l.b16 %v119
    %v159 = vunpack.c.l.b16 %v120
    %v160 = vunpack.c.l.b16 %v121
    %v161 = vunpack.c.l.b16 %v122
    %v162 = vunpack.c.l.b16 %v123
    %v163 = vunpack.c.l.b16 %v124
    %v164 = vunpack.c.l.b16 %v125
    %v165 = vunpack.c.l.b16 %v126
    %v166 = vpack.c.b16 %v151, %v150
    %v167 = vpack.c.b16 %v153, %v152
    %v168 = vpack.c.b16 %v155, %v154
    %v169 = vpack.c.b16 %v157, %v156
    %v170 = vpack.c.b16 %v159, %v158
    %v171 = vpack.c.b16 %v161, %v160
    %v172 = vpack.c.b16 %v163, %v162
    %v173 = vpack.c.b16 %v165, %v164
    %182 = vmatprep.subr.bf16.mxu0 0
    %183 = vmatpush1.bf16.msra.mxu0 %v173
    %184 = vmatprep.subr.bf16.mxu0 0
    %185 = vmatpush1.bf16.msra.mxu0 %v172
    %186 = vmatprep.subr.bf16.mxu0 0
    %187 = vmatpush1.bf16.msra.mxu0 %v171
    %188 = vmatprep.subr.bf16.mxu0 0
    %189 = vmatpush1.bf16.msra.mxu0 %v170
    %190 = vmatprep.subr.bf16.mxu0 0
    %191 = vmatpush1.bf16.msra.mxu0 %v169
    %192 = vmatprep.subr.bf16.mxu0 0
    %193 = vmatpush1.bf16.msra.mxu0 %v168
    %194 = vmatprep.subr.bf16.mxu0 0
    %195 = vmatpush1.bf16.msra.mxu0 %v167
    %196 = vmatprep.subr.bf16.mxu0 0
    %197 = vmatpush1.bf16.msra.mxu0 %v166
    %198 = vmatprep.subr.bf16.mxu0 0
    %199 = vmatpush2.bf16.msra.mxu0 0
    %200 = vmatprep.subr.bf16.mxu0 0
    %201 = vmatpush2.bf16.msra.mxu0 0
    %202 = vmatprep.subr.bf16.mxu0 0
    %203 = vmatpush2.bf16.msra.mxu0 0
    %204 = vmatprep.subr.bf16.mxu0 0
    %205 = vmatpush2.bf16.msra.mxu0 0
    %206 = vmatprep.subr.bf16.mxu0 0
    %207 = vmatpush2.bf16.msra.mxu0 0
    %208 = vmatprep.subr.bf16.mxu0 0
    %209 = vmatpush2.bf16.msra.mxu0 0
    %210 = vmatprep.subr.bf16.mxu0 0
    %211 = vmatpush2.bf16.msra.mxu0 0
    %212 = vmatprep.subr.bf16.mxu0 0
    %213 = vmatpush2.bf16.msra.mxu0 0
    %214 = vmatprep.mubr.bf16.mxu0 0
    %215 = vmatmul.mubr.bf16.gmra.mxu0 %v107
    %v216 = vpop.f32.mrf.mxu0
    %v217 = vadd.f32 %v132, %v216
    %v218 = vpop.f32.mrf.mxu0
    %v219 = vpop.f32.mrf.mxu0
    %v220 = vadd.f32 %v132, %v219
    %v221 = vpop.f32.mrf.mxu0
    %222 = vmatprep.mubr.bf16.mxu0 0
    %223 = vmatmul.mubr.bf16.gmra.mxu0 %v108
    %v224 = vpop.f32.mrf.mxu0
    %v225 = vadd.f32 %v132, %v224
    %v226 = vpop.f32.mrf.mxu0
    %v227 = vpop.f32.mrf.mxu0
    %v228 = vadd.f32 %v132, %v227
    %v229 = vpop.f32.mrf.mxu0
    %230 = vmatprep.mubr.bf16.mxu0 0
    %231 = vmatmul.mubr.bf16.gmra.mxu0 %v109
    %v232 = vpop.f32.mrf.mxu0
    %v233 = vadd.f32 %v132, %v232
    %v234 = vpop.f32.mrf.mxu0
    %v235 = vpop.f32.mrf.mxu0
    %v236 = vadd.f32 %v132, %v235
    %v237 = vpop.f32.mrf.mxu0
    %238 = vmatprep.mubr.bf16.mxu0 0
    %239 = vmatmul.mubr.bf16.gmra.mxu0 %v110
    %v240 = vpop.f32.mrf.mxu0
    %v241 = vadd.f32 %v132, %v240
    %v242 = vpop.f32.mrf.mxu0
    %v243 = vpop.f32.mrf.mxu0
    %v244 = vadd.f32 %v132, %v243
    %v245 = vpop.f32.mrf.mxu0
    %246 = vdwg.mxu0
    %v247 = vadd.f32 %v217, %v220
    %v248 = vadd.f32 %v247, %v225
    %v249 = vadd.f32 %v248, %v228
    %v250 = vadd.f32 %v249, %v233
    %v251 = vadd.f32 %v250, %v236
    %v252 = vadd.f32 %v251, %v241
    %v253 = vadd.f32 %v252, %v244
    %v254 = vrot.slane %v253, 4
    %v255 = vadd.f32 %v253, %v254
    %v256 = vrot.slane %v255, 2
    %v257 = vadd.f32 %v255, %v256
    %v258 = vrot.slane %v257, 1
    %v259 = vadd.f32 %v257, %v258
    %v260 = vmul.f32 %v259, 0.015625
    %v261 = vmul.f32 %v217, %v217
    %v262 = vmul.f32 %v220, %v220
    %v263 = vmul.f32 %v225, %v225
    %v264 = vmul.f32 %v228, %v228
    %v265 = vmul.f32 %v233, %v233
    %v266 = vmul.f32 %v236, %v236
    %v267 = vmul.f32 %v241, %v241
    %v268 = vmul.f32 %v244, %v244
    %v269 = vadd.f32 %v261, %v262
    %v270 = vadd.f32 %v269, %v263
    %v271 = vadd.f32 %v270, %v264
    %v272 = vadd.f32 %v271, %v265
    %v273 = vadd.f32 %v272, %v266
    %v274 = vadd.f32 %v273, %v267
    %v275 = vadd.f32 %v274, %v268
    %v276 = vrot.slane %v275, 4
    %v277 = vadd.f32 %v275, %v276
    %v278 = vrot.slane %v277, 2
    %v279 = vadd.f32 %v277, %v278
    %v280 = vrot.slane %v279, 1
    %v281 = vadd.f32 %v279, %v280
    %v282 = vmul.f32 %v281, 0.015625
    %v283 = vmul.f32 %v260, %v260
    %v284 = vsub.f32 %v282, %v283
    %v285 = vmax.f32 %v284, 0.0
    %v286 = vsub.f32 %v217, %v260
    %v287 = vsub.f32 %v220, %v260
    %v288 = vsub.f32 %v225, %v260
    %v289 = vsub.f32 %v228, %v260
    %v290 = vsub.f32 %v233, %v260
    %v291 = vsub.f32 %v236, %v260
    %v292 = vsub.f32 %v241, %v260
    %v293 = vsub.f32 %v244, %v260
    %v294 = vadd.f32 %v285, 1e-05
    %v295 = vrsqrt.pop %v294
    %v296 = vmul.f32 %v286, %v295
    %v297 = vmul.f32 %v287, %v295
    %v298 = vmul.f32 %v288, %v295
    %v299 = vmul.f32 %v289, %v295
    %v300 = vmul.f32 %v290, %v295
    %v301 = vmul.f32 %v291, %v295
    %v302 = vmul.f32 %v292, %v295
    %v303 = vmul.f32 %v293, %v295
    %v304 = vld [vmem:[%s4] sm:$0x1]
    %v306 = vlaneseq
    %v307 = vshrl.u32 %v306, 7
    %v308 = vsub.s32 0, %v307
    %v309 = vrot.slane %v304, %v308
    %v311 = vmul.f32 %v296, %v309
    %v312 = vmul.f32 %v297, %v309
    %v313 = vmul.f32 %v298, %v309
    %v314 = vmul.f32 %v299, %v309
    %v315 = vmul.f32 %v300, %v309
    %v316 = vmul.f32 %v301, %v309
    %v317 = vmul.f32 %v302, %v309
    %v318 = vmul.f32 %v303, %v309
    %v319 = vld [vmem:[%s5] sm:$0x1]
    %v321 = vlaneseq
    %v322 = vshrl.u32 %v321, 7
    %v323 = vsub.s32 0, %v322
    %v324 = vrot.slane %v319, %v323
    %v326 = vadd.f32 %v311, %v324
    %v327 = vadd.f32 %v312, %v324
    %v328 = vadd.f32 %v313, %v324
    %v329 = vadd.f32 %v314, %v324
    %v330 = vadd.f32 %v315, %v324
    %v331 = vadd.f32 %v316, %v324
    %v332 = vadd.f32 %v317, %v324
    %v333 = vadd.f32 %v318, %v324
    %v334 = vmax.f32 %v326, 0.0
    %v335 = vmax.f32 %v327, 0.0
    %v336 = vmax.f32 %v328, 0.0
    %v337 = vmax.f32 %v329, 0.0
    %v338 = vmax.f32 %v330, 0.0
    %v339 = vmax.f32 %v331, 0.0
    %v340 = vmax.f32 %v332, 0.0
    %v341 = vmax.f32 %v333, 0.0
    %s342 = sld [smem:[#allocation2]]
    %v343 = vlaneseq
    %v344 = vshrl.u32 %v343, 7
    %v345 = vadd.s32 %v344, 8
    %v346 = vadd.s32 %v344, 16
    %v347 = vadd.s32 %v344, 24
    %v348 = vadd.s32 %v344, 32
    %v349 = vadd.s32 %v344, 40
    %v350 = vadd.s32 %v344, 48
    %v351 = vadd.s32 %v344, 56
    %v352 = vlaneseq
    %v353 = vand.u32 %v352, 127
    %v354 = vmul.u32 %v344, 128
    %v355 = vmul.u32 %v345, 128
    %v356 = vmul.u32 %v346, 128
    %v357 = vmul.u32 %v347, 128
    %v358 = vmul.u32 %v348, 128
    %v359 = vmul.u32 %v349, 128
    %v360 = vmul.u32 %v350, 128
    %v361 = vmul.u32 %v351, 128
    %v362 = vadd.s32 %v354, %v353
    %v363 = vadd.s32 %v355, %v353
    %v364 = vadd.s32 %v356, %v353
    %v365 = vadd.s32 %v357, %v353
    %v366 = vadd.s32 %v358, %v353
    %v367 = vadd.s32 %v359, %v353
    %v368 = vadd.s32 %v360, %v353
    %v369 = vadd.s32 %v361, %v353
    %s370 = smul.u32 %s342, 2654435769
    %s371 = sadd.s32 %s370, 2246822507
    %v372 = vstv %s371
    %v373 = vxor.u32 %v362, %v372
    %v374 = vxor.u32 %v363, %v372
    %v375 = vxor.u32 %v364, %v372
    %v376 = vxor.u32 %v365, %v372
    %v377 = vxor.u32 %v366, %v372
    %v378 = vxor.u32 %v367, %v372
    %v379 = vxor.u32 %v368, %v372
    %v380 = vxor.u32 %v369, %v372
    %v381 = vshrl.u32 %v373, 16
    %v382 = vshrl.u32 %v374, 16
    %v383 = vshrl.u32 %v375, 16
    %v384 = vshrl.u32 %v376, 16
    %v385 = vshrl.u32 %v377, 16
    %v386 = vshrl.u32 %v378, 16
    %v387 = vshrl.u32 %v379, 16
    %v388 = vshrl.u32 %v380, 16
    %v389 = vxor.u32 %v373, %v381
    %v390 = vxor.u32 %v374, %v382
    %v391 = vxor.u32 %v375, %v383
    %v392 = vxor.u32 %v376, %v384
    %v393 = vxor.u32 %v377, %v385
    %v394 = vxor.u32 %v378, %v386
    %v395 = vxor.u32 %v379, %v387
    %v396 = vxor.u32 %v380, %v388
    %v397 = vmul.u32 %v389, 2146121005
    %v398 = vmul.u32 %v390, 2146121005
    %v399 = vmul.u32 %v391, 2146121005
    %v400 = vmul.u32 %v392, 2146121005
    %v401 = vmul.u32 %v393, 2146121005
    %v402 = vmul.u32 %v394, 2146121005
    %v403 = vmul.u32 %v395, 2146121005
    %v404 = vmul.u32 %v396, 2146121005
    %v405 = vshrl.u32 %v397, 15
    %v406 = vshrl.u32 %v398, 15
    %v407 = vshrl.u32 %v399, 15
    %v408 = vshrl.u32 %v400, 15
    %v409 = vshrl.u32 %v401, 15
    %v410 = vshrl.u32 %v402, 15
    %v411 = vshrl.u32 %v403, 15
    %v412 = vshrl.u32 %v404, 15
    %v413 = vxor.u32 %v397, %v405
    %v414 = vxor.u32 %v398, %v406
    %v415 = vxor.u32 %v399, %v407
    %v416 = vxor.u32 %v400, %v408
    %v417 = vxor.u32 %v401, %v409
    %v418 = vxor.u32 %v402, %v410
    %v419 = vxor.u32 %v403, %v411
    %v420 = vxor.u32 %v404, %v412
    %v421 = vmul.u32 %v413, 2221713035
    %v422 = vmul.u32 %v414, 2221713035
    %v423 = vmul.u32 %v415, 2221713035
    %v424 = vmul.u32 %v416, 2221713035
    %v425 = vmul.u32 %v417, 2221713035
    %v426 = vmul.u32 %v418, 2221713035
    %v427 = vmul.u32 %v419, 2221713035
    %v428 = vmul.u32 %v420, 2221713035
    %v429 = vshrl.u32 %v421, 16
    %v430 = vshrl.u32 %v422, 16
    %v431 = vshrl.u32 %v423, 16
    %v432 = vshrl.u32 %v424, 16
    %v433 = vshrl.u32 %v425, 16
    %v434 = vshrl.u32 %v426, 16
    %v435 = vshrl.u32 %v427, 16
    %v436 = vshrl.u32 %v428, 16
    %v437 = vxor.u32 %v421, %v429
    %v438 = vxor.u32 %v422, %v430
    %v439 = vxor.u32 %v423, %v431
    %v440 = vxor.u32 %v424, %v432
    %v441 = vxor.u32 %v425, %v433
    %v442 = vxor.u32 %v426, %v434
    %v443 = vxor.u32 %v427, %v435
    %v444 = vxor.u32 %v428, %v436
    %v445 = vshrl.u32 %v437, 1
    %v446 = vshrl.u32 %v438, 1
    %v447 = vshrl.u32 %v439, 1
    %v448 = vshrl.u32 %v440, 1
    %v449 = vshrl.u32 %v441, 1
    %v450 = vshrl.u32 %v442, 1
    %v451 = vshrl.u32 %v443, 1
    %v452 = vshrl.u32 %v444, 1
    %vm453 = vcmp.ge.s32.totalorder %v445, 1073741824
    %vm454 = vcmp.ge.s32.totalorder %v446, 1073741824
    %vm455 = vcmp.ge.s32.totalorder %v447, 1073741824
    %vm456 = vcmp.ge.s32.totalorder %v448, 1073741824
    %vm457 = vcmp.ge.s32.totalorder %v449, 1073741824
    %vm458 = vcmp.ge.s32.totalorder %v450, 1073741824
    %vm459 = vcmp.ge.s32.totalorder %v451, 1073741824
    %vm460 = vcmp.ge.s32.totalorder %v452, 1073741824
    %v461 = vmul.f32 %v334, 2.0
    %v462 = vmul.f32 %v335, 2.0
    %v463 = vmul.f32 %v336, 2.0
    %v464 = vmul.f32 %v337, 2.0
    %v465 = vmul.f32 %v338, 2.0
    %v466 = vmul.f32 %v339, 2.0
    %v467 = vmul.f32 %v340, 2.0
    %v468 = vmul.f32 %v341, 2.0
    %v469 = vsel %vm453, %v461, 0.0
    %v470 = vsel %vm454, %v462, 0.0
    %v471 = vsel %vm455, %v463, 0.0
    %v472 = vsel %vm456, %v464, 0.0
    %v473 = vsel %vm457, %v465, 0.0
    %v474 = vsel %vm458, %v466, 0.0
    %v475 = vsel %vm459, %v467, 0.0
    %v476 = vsel %vm460, %v468, 0.0
    %v477 = vpack.c.bf16 %v470, %v469
    %v478 = vpack.c.bf16 %v472, %v471
    %v479 = vpack.c.bf16 %v474, %v473
    %v480 = vpack.c.bf16 %v476, %v475
    %v481 = vld [vmem:[#allocation8] sm:$0xf]
    %v482 = vld [vmem:[#allocation8 + $0x4] sm:$0xf]
    %v483 = vld [vmem:[#allocation8 + $0x8] sm:$0xf]
    %v484 = vld [vmem:[#allocation8 + $0xc] sm:$0xf]
    %v485 = vld [vmem:[#allocation8 + $0x10] sm:$0xf]
    %v486 = vld [vmem:[#allocation8 + $0x14] sm:$0xf]
    %v487 = vld [vmem:[#allocation8 + $0x18] sm:$0xf]
    %v488 = vld [vmem:[#allocation8 + $0x1c] sm:$0xf]
    %v489 = vld [vmem:[#allocation8 + $0x20] sm:$0xf]
    %v490 = vld [vmem:[#allocation8 + $0x24] sm:$0xf]
    %v491 = vld [vmem:[#allocation8 + $0x28] sm:$0xf]
    %v492 = vld [vmem:[#allocation8 + $0x2c] sm:$0xf]
    %v493 = vld [vmem:[#allocation8 + $0x30] sm:$0xf]
    %v494 = vld [vmem:[#allocation8 + $0x34] sm:$0xf]
    %v495 = vld [vmem:[#allocation8 + $0x38] sm:$0xf]
    %v496 = vld [vmem:[#allocation8 + $0x3c] sm:$0xf]
    %v497 = vld [vmem:[%s7] sm:$0x1]
    %v499 = vlaneseq
    %v500 = vshrl.u32 %v499, 7
    %v501 = vsub.s32 0, %v500
    %v502 = vrot.slane %v497, %v501
    %v520 = vunpack.c.l.b16 %v481
    %v521 = vunpack.c.l.b16 %v482
    %v522 = vunpack.c.l.b16 %v483
    %v523 = vunpack.c.l.b16 %v484
    %v524 = vunpack.c.l.b16 %v485
    %v525 = vunpack.c.l.b16 %v486
    %v526 = vunpack.c.l.b16 %v487
    %v527 = vunpack.c.l.b16 %v488
    %v528 = vunpack.c.l.b16 %v489
    %v529 = vunpack.c.l.b16 %v490
    %v530 = vunpack.c.l.b16 %v491
    %v531 = vunpack.c.l.b16 %v492
    %v532 = vunpack.c.l.b16 %v493
    %v533 = vunpack.c.l.b16 %v494
    %v534 = vunpack.c.l.b16 %v495
    %v535 = vunpack.c.l.b16 %v496
    %v536 = vpack.c.b16 %v521, %v520
    %v537 = vpack.c.b16 %v523, %v522
    %v538 = vpack.c.b16 %v525, %v524
    %v539 = vpack.c.b16 %v527, %v526
    %v540 = vpack.c.b16 %v529, %v528
    %v541 = vpack.c.b16 %v531, %v530
    %v542 = vpack.c.b16 %v533, %v532
    %v543 = vpack.c.b16 %v535, %v534
    %552 = vmatprep.subr.bf16.mxu0 0
    %553 = vmatpush1.bf16.msra.mxu0 %v543
    %554 = vmatprep.subr.bf16.mxu0 0
    %555 = vmatpush1.bf16.msra.mxu0 %v542
    %556 = vmatprep.subr.bf16.mxu0 0
    %557 = vmatpush1.bf16.msra.mxu0 %v541
    %558 = vmatprep.subr.bf16.mxu0 0
    %559 = vmatpush1.bf16.msra.mxu0 %v540
    %560 = vmatprep.subr.bf16.mxu0 0
    %561 = vmatpush1.bf16.msra.mxu0 %v539
    %562 = vmatprep.subr.bf16.mxu0 0
    %563 = vmatpush1.bf16.msra.mxu0 %v538
    %564 = vmatprep.subr.bf16.mxu0 0
    %565 = vmatpush1.bf16.msra.mxu0 %v537
    %566 = vmatprep.subr.bf16.mxu0 0
    %567 = vmatpush1.bf16.msra.mxu0 %v536
    %568 = vmatprep.subr.bf16.mxu0 0
    %569 = vmatpush2.bf16.msra.mxu0 0
    %570 = vmatprep.subr.bf16.mxu0 0
    %571 = vmatpush2.bf16.msra.mxu0 0
    %572 = vmatprep.subr.bf16.mxu0 0
    %573 = vmatpush2.bf16.msra.mxu0 0
    %574 = vmatprep.subr.bf16.mxu0 0
    %575 = vmatpush2.bf16.msra.mxu0 0
    %576 = vmatprep.subr.bf16.mxu0 0
    %577 = vmatpush2.bf16.msra.mxu0 0
    %578 = vmatprep.subr.bf16.mxu0 0
    %579 = vmatpush2.bf16.msra.mxu0 0
    %580 = vmatprep.subr.bf16.mxu0 0
    %581 = vmatpush2.bf16.msra.mxu0 0
    %582 = vmatprep.subr.bf16.mxu0 0
    %583 = vmatpush2.bf16.msra.mxu0 0
    %584 = vmatprep.mubr.bf16.mxu0 0
    %585 = vmatmul.mubr.bf16.gmra.mxu0 %v477
    %v586 = vpop.f32.mrf.mxu0
    %v587 = vadd.f32 %v502, %v586
    %v588 = vpop.f32.mrf.mxu0
    %v589 = vpop.f32.mrf.mxu0
    %v590 = vadd.f32 %v502, %v589
    %v591 = vpop.f32.mrf.mxu0
    %592 = vmatprep.mubr.bf16.mxu0 0
    %593 = vmatmul.mubr.bf16.gmra.mxu0 %v478
    %v594 = vpop.f32.mrf.mxu0
    %v595 = vadd.f32 %v502, %v594
    %v596 = vpop.f32.mrf.mxu0
    %v597 = vpop.f32.mrf.mxu0
    %v598 = vadd.f32 %v502, %v597
    %v599 = vpop.f32.mrf.mxu0
    %600 = vmatprep.mubr.bf16.mxu0 0
    %601 = vmatmul.mubr.bf16.gmra.mxu0 %v479
    %v602 = vpop.f32.mrf.mxu0
    %v603 = vadd.f32 %v502, %v602
    %v604 = vpop.f32.mrf.mxu0
    %v605 = vpop.f32.mrf.mxu0
    %v606 = vadd.f32 %v502, %v605
    %v607 = vpop.f32.mrf.mxu0
    %608 = vmatprep.mubr.bf16.mxu0 0
    %609 = vmatmul.mubr.bf16.gmra.mxu0 %v480
    %v610 = vpop.f32.mrf.mxu0
    %v611 = vadd.f32 %v502, %v610
    %v612 = vpop.f32.mrf.mxu0
    %v613 = vpop.f32.mrf.mxu0
    %v614 = vadd.f32 %v502, %v613
    %v615 = vpop.f32.mrf.mxu0
    %616 = vdwg.mxu0
    %v617 = vadd.f32 %v587, %v590
    %v618 = vadd.f32 %v617, %v595
    %v619 = vadd.f32 %v618, %v598
    %v620 = vadd.f32 %v619, %v603
    %v621 = vadd.f32 %v620, %v606
    %v622 = vadd.f32 %v621, %v611
    %v623 = vadd.f32 %v622, %v614
    %v624 = vrot.slane %v623, 4
    %v625 = vadd.f32 %v623, %v624
    %v626 = vrot.slane %v625, 2
    %v627 = vadd.f32 %v625, %v626
    %v628 = vrot.slane %v627, 1
    %v629 = vadd.f32 %v627, %v628
    %v630 = vmul.f32 %v629, 0.015625
    %v631 = vmul.f32 %v587, %v587
    %v632 = vmul.f32 %v590, %v590
    %v633 = vmul.f32 %v595, %v595
    %v634 = vmul.f32 %v598, %v598
    %v635 = vmul.f32 %v603, %v603
    %v636 = vmul.f32 %v606, %v606
    %v637 = vmul.f32 %v611, %v611
    %v638 = vmul.f32 %v614, %v614
    %v639 = vadd.f32 %v631, %v632
    %v640 = vadd.f32 %v639, %v633
    %v641 = vadd.f32 %v640, %v634
    %v642 = vadd.f32 %v641, %v635
    %v643 = vadd.f32 %v642, %v636
    %v644 = vadd.f32 %v643, %v637
    %v645 = vadd.f32 %v644, %v638
    %v646 = vrot.slane %v645, 4
    %v647 = vadd.f32 %v645, %v646
    %v648 = vrot.slane %v647, 2
    %v649 = vadd.f32 %v647, %v648
    %v650 = vrot.slane %v649, 1
    %v651 = vadd.f32 %v649, %v650
    %v652 = vmul.f32 %v651, 0.015625
    %v653 = vmul.f32 %v630, %v630
    %v654 = vsub.f32 %v652, %v653
    %v655 = vmax.f32 %v654, 0.0
    %v656 = vsub.f32 %v587, %v630
    %v657 = vsub.f32 %v590, %v630
    %v658 = vsub.f32 %v595, %v630
    %v659 = vsub.f32 %v598, %v630
    %v660 = vsub.f32 %v603, %v630
    %v661 = vsub.f32 %v606, %v630
    %v662 = vsub.f32 %v611, %v630
    %v663 = vsub.f32 %v614, %v630
    %v664 = vadd.f32 %v655, 1e-05
    %v665 = vrsqrt.pop %v664
    %v666 = vmul.f32 %v656, %v665
    %v667 = vmul.f32 %v657, %v665
    %v668 = vmul.f32 %v658, %v665
    %v669 = vmul.f32 %v659, %v665
    %v670 = vmul.f32 %v660, %v665
    %v671 = vmul.f32 %v661, %v665
    %v672 = vmul.f32 %v662, %v665
    %v673 = vmul.f32 %v663, %v665
    %v674 = vld [vmem:[%s8] sm:$0x1]
    %v676 = vlaneseq
    %v677 = vshrl.u32 %v676, 7
    %v678 = vsub.s32 0, %v677
    %v679 = vrot.slane %v674, %v678
    %v681 = vmul.f32 %v666, %v679
    %v682 = vmul.f32 %v667, %v679
    %v683 = vmul.f32 %v668, %v679
    %v684 = vmul.f32 %v669, %v679
    %v685 = vmul.f32 %v670, %v679
    %v686 = vmul.f32 %v671, %v679
    %v687 = vmul.f32 %v672, %v679
    %v688 = vmul.f32 %v673, %v679
    %v689 = vld [vmem:[%s9] sm:$0x1]
    %v691 = vlaneseq
    %v692 = vshrl.u32 %v691, 7
    %v693 = vsub.s32 0, %v692
    %v694 = vrot.slane %v689, %v693
    %v696 = vadd.f32 %v681, %v694
    %v697 = vadd.f32 %v682, %v694
    %v698 = vadd.f32 %v683, %v694
    %v699 = vadd.f32 %v684, %v694
    %v700 = vadd.f32 %v685, %v694
    %v701 = vadd.f32 %v686, %v694
    %v702 = vadd.f32 %v687, %v694
    %v703 = vadd.f32 %v688, %v694
    %v704 = vmax.f32 %v696, 0.0
    %v705 = vmax.f32 %v697, 0.0
    %v706 = vmax.f32 %v698, 0.0
    %v707 = vmax.f32 %v699, 0.0
    %v708 = vmax.f32 %v700, 0.0
    %v709 = vmax.f32 %v701, 0.0
    %v710 = vmax.f32 %v702, 0.0
    %v711 = vmax.f32 %v703, 0.0
    %s712 = sadd.s32 %s370, 198677718
    %v713 = vstv %s712
    %v714 = vxor.u32 %v362, %v713
    %v715 = vxor.u32 %v363, %v713
    %v716 = vxor.u32 %v364, %v713
    %v717 = vxor.u32 %v365, %v713
    %v718 = vxor.u32 %v366, %v713
    %v719 = vxor.u32 %v367, %v713
    %v720 = vxor.u32 %v368, %v713
    %v721 = vxor.u32 %v369, %v713
    %v722 = vshrl.u32 %v714, 16
    %v723 = vshrl.u32 %v715, 16
    %v724 = vshrl.u32 %v716, 16
    %v725 = vshrl.u32 %v717, 16
    %v726 = vshrl.u32 %v718, 16
    %v727 = vshrl.u32 %v719, 16
    %v728 = vshrl.u32 %v720, 16
    %v729 = vshrl.u32 %v721, 16
    %v730 = vxor.u32 %v714, %v722
    %v731 = vxor.u32 %v715, %v723
    %v732 = vxor.u32 %v716, %v724
    %v733 = vxor.u32 %v717, %v725
    %v734 = vxor.u32 %v718, %v726
    %v735 = vxor.u32 %v719, %v727
    %v736 = vxor.u32 %v720, %v728
    %v737 = vxor.u32 %v721, %v729
    %v738 = vmul.u32 %v730, 2146121005
    %v739 = vmul.u32 %v731, 2146121005
    %v740 = vmul.u32 %v732, 2146121005
    %v741 = vmul.u32 %v733, 2146121005
    %v742 = vmul.u32 %v734, 2146121005
    %v743 = vmul.u32 %v735, 2146121005
    %v744 = vmul.u32 %v736, 2146121005
    %v745 = vmul.u32 %v737, 2146121005
    %v746 = vshrl.u32 %v738, 15
    %v747 = vshrl.u32 %v739, 15
    %v748 = vshrl.u32 %v740, 15
    %v749 = vshrl.u32 %v741, 15
    %v750 = vshrl.u32 %v742, 15
    %v751 = vshrl.u32 %v743, 15
    %v752 = vshrl.u32 %v744, 15
    %v753 = vshrl.u32 %v745, 15
    %v754 = vxor.u32 %v738, %v746
    %v755 = vxor.u32 %v739, %v747
    %v756 = vxor.u32 %v740, %v748
    %v757 = vxor.u32 %v741, %v749
    %v758 = vxor.u32 %v742, %v750
    %v759 = vxor.u32 %v743, %v751
    %v760 = vxor.u32 %v744, %v752
    %v761 = vxor.u32 %v745, %v753
    %v762 = vmul.u32 %v754, 2221713035
    %v763 = vmul.u32 %v755, 2221713035
    %v764 = vmul.u32 %v756, 2221713035
    %v765 = vmul.u32 %v757, 2221713035
    %v766 = vmul.u32 %v758, 2221713035
    %v767 = vmul.u32 %v759, 2221713035
    %v768 = vmul.u32 %v760, 2221713035
    %v769 = vmul.u32 %v761, 2221713035
    %v770 = vshrl.u32 %v762, 16
    %v771 = vshrl.u32 %v763, 16
    %v772 = vshrl.u32 %v764, 16
    %v773 = vshrl.u32 %v765, 16
    %v774 = vshrl.u32 %v766, 16
    %v775 = vshrl.u32 %v767, 16
    %v776 = vshrl.u32 %v768, 16
    %v777 = vshrl.u32 %v769, 16
    %v778 = vxor.u32 %v762, %v770
    %v779 = vxor.u32 %v763, %v771
    %v780 = vxor.u32 %v764, %v772
    %v781 = vxor.u32 %v765, %v773
    %v782 = vxor.u32 %v766, %v774
    %v783 = vxor.u32 %v767, %v775
    %v784 = vxor.u32 %v768, %v776
    %v785 = vxor.u32 %v769, %v777
    %v786 = vshrl.u32 %v778, 1
    %v787 = vshrl.u32 %v779, 1
    %v788 = vshrl.u32 %v780, 1
    %v789 = vshrl.u32 %v781, 1
    %v790 = vshrl.u32 %v782, 1
    %v791 = vshrl.u32 %v783, 1
    %v792 = vshrl.u32 %v784, 1
    %v793 = vshrl.u32 %v785, 1
    %vm794 = vcmp.ge.s32.totalorder %v786, 1073741824
    %vm795 = vcmp.ge.s32.totalorder %v787, 1073741824
    %vm796 = vcmp.ge.s32.totalorder %v788, 1073741824
    %vm797 = vcmp.ge.s32.totalorder %v789, 1073741824
    %vm798 = vcmp.ge.s32.totalorder %v790, 1073741824
    %vm799 = vcmp.ge.s32.totalorder %v791, 1073741824
    %vm800 = vcmp.ge.s32.totalorder %v792, 1073741824
    %vm801 = vcmp.ge.s32.totalorder %v793, 1073741824
    %v802 = vmul.f32 %v704, 2.0
    %v803 = vmul.f32 %v705, 2.0
    %v804 = vmul.f32 %v706, 2.0
    %v805 = vmul.f32 %v707, 2.0
    %v806 = vmul.f32 %v708, 2.0
    %v807 = vmul.f32 %v709, 2.0
    %v808 = vmul.f32 %v710, 2.0
    %v809 = vmul.f32 %v711, 2.0
    %v810 = vsel %vm794, %v802, 0.0
    %v811 = vsel %vm795, %v803, 0.0
    %v812 = vsel %vm796, %v804, 0.0
    %v813 = vsel %vm797, %v805, 0.0
    %v814 = vsel %vm798, %v806, 0.0
    %v815 = vsel %vm799, %v807, 0.0
    %v816 = vsel %vm800, %v808, 0.0
    %v817 = vsel %vm801, %v809, 0.0
    %v818 = vpack.c.bf16 %v811, %v810
    %v819 = vpack.c.bf16 %v813, %v812
    %v820 = vpack.c.bf16 %v815, %v814
    %v821 = vpack.c.bf16 %v817, %v816
    %v822 = vld [vmem:[#allocation9] sm:$0xf]
    %v823 = vld [vmem:[#allocation9 + $0x4] sm:$0xf]
    %v824 = vld [vmem:[#allocation9 + $0x8] sm:$0xf]
    %v825 = vld [vmem:[#allocation9 + $0xc] sm:$0xf]
    %v826 = vld [vmem:[#allocation9 + $0x10] sm:$0xf]
    %v827 = vld [vmem:[#allocation9 + $0x14] sm:$0xf]
    %v828 = vld [vmem:[#allocation9 + $0x18] sm:$0xf]
    %v829 = vld [vmem:[#allocation9 + $0x1c] sm:$0xf]
    %v830 = vld [vmem:[#allocation9 + $0x20] sm:$0xf]
    %v831 = vld [vmem:[#allocation9 + $0x24] sm:$0xf]
    %v832 = vld [vmem:[#allocation9 + $0x28] sm:$0xf]
    %v833 = vld [vmem:[#allocation9 + $0x2c] sm:$0xf]
    %v834 = vld [vmem:[#allocation9 + $0x30] sm:$0xf]
    %v835 = vld [vmem:[#allocation9 + $0x34] sm:$0xf]
    %v836 = vld [vmem:[#allocation9 + $0x38] sm:$0xf]
    %v837 = vld [vmem:[#allocation9 + $0x3c] sm:$0xf]
    %v838 = vld [vmem:[%s11] sm:$0x1]
    %v840 = vlaneseq
    %v841 = vshrl.u32 %v840, 7
    %v842 = vsub.s32 0, %v841
    %v843 = vrot.slane %v838, %v842
    %v861 = vunpack.c.l.b16 %v822
    %v862 = vunpack.c.l.b16 %v823
    %v863 = vunpack.c.l.b16 %v824
    %v864 = vunpack.c.l.b16 %v825
    %v865 = vunpack.c.l.b16 %v826
    %v866 = vunpack.c.l.b16 %v827
    %v867 = vunpack.c.l.b16 %v828
    %v868 = vunpack.c.l.b16 %v829
    %v869 = vunpack.c.l.b16 %v830
    %v870 = vunpack.c.l.b16 %v831
    %v871 = vunpack.c.l.b16 %v832
    %v872 = vunpack.c.l.b16 %v833
    %v873 = vunpack.c.l.b16 %v834
    %v874 = vunpack.c.l.b16 %v835
    %v875 = vunpack.c.l.b16 %v836
    %v876 = vunpack.c.l.b16 %v837
    %v877 = vpack.c.b16 %v862, %v861
    %v878 = vpack.c.b16 %v864, %v863
    %v879 = vpack.c.b16 %v866, %v865
    %v880 = vpack.c.b16 %v868, %v867
    %v881 = vpack.c.b16 %v870, %v869
    %v882 = vpack.c.b16 %v872, %v871
    %v883 = vpack.c.b16 %v874, %v873
    %v884 = vpack.c.b16 %v876, %v875
    %893 = vmatprep.subr.bf16.mxu0 0
    %894 = vmatpush1.bf16.msra.mxu0 %v884
    %895 = vmatprep.subr.bf16.mxu0 0
    %896 = vmatpush1.bf16.msra.mxu0 %v883
    %897 = vmatprep.subr.bf16.mxu0 0
    %898 = vmatpush1.bf16.msra.mxu0 %v882
    %899 = vmatprep.subr.bf16.mxu0 0
    %900 = vmatpush1.bf16.msra.mxu0 %v881
    %901 = vmatprep.subr.bf16.mxu0 0
    %902 = vmatpush1.bf16.msra.mxu0 %v880
    %903 = vmatprep.subr.bf16.mxu0 0
    %904 = vmatpush1.bf16.msra.mxu0 %v879
    %905 = vmatprep.subr.bf16.mxu0 0
    %906 = vmatpush1.bf16.msra.mxu0 %v878
    %907 = vmatprep.subr.bf16.mxu0 0
    %908 = vmatpush1.bf16.msra.mxu0 %v877
    %909 = vmatprep.subr.bf16.mxu0 0
    %910 = vmatpush2.bf16.msra.mxu0 0
    %911 = vmatprep.subr.bf16.mxu0 0
    %912 = vmatpush2.bf16.msra.mxu0 0
    %913 = vmatprep.subr.bf16.mxu0 0
    %914 = vmatpush2.bf16.msra.mxu0 0
    %915 = vmatprep.subr.bf16.mxu0 0
    %916 = vmatpush2.bf16.msra.mxu0 0
    %917 = vmatprep.subr.bf16.mxu0 0
    %918 = vmatpush2.bf16.msra.mxu0 0
    %919 = vmatprep.subr.bf16.mxu0 0
    %920 = vmatpush2.bf16.msra.mxu0 0
    %921 = vmatprep.subr.bf16.mxu0 0
    %922 = vmatpush2.bf16.msra.mxu0 0
    %923 = vmatprep.subr.bf16.mxu0 0
    %924 = vmatpush2.bf16.msra.mxu0 0
    %925 = vmatprep.mubr.bf16.mxu0 0
    %926 = vmatmul.mubr.bf16.gmra.mxu0 %v818
    %v927 = vpop.f32.mrf.mxu0
    %v928 = vadd.f32 %v843, %v927
    %v929 = vpop.f32.mrf.mxu0
    %v930 = vpop.f32.mrf.mxu0
    %v931 = vadd.f32 %v843, %v930
    %v932 = vpop.f32.mrf.mxu0
    %933 = vmatprep.mubr.bf16.mxu0 0
    %934 = vmatmul.mubr.bf16.gmra.mxu0 %v819
    %v935 = vpop.f32.mrf.mxu0
    %v936 = vadd.f32 %v843, %v935
    %v937 = vpop.f32.mrf.mxu0
    %v938 = vpop.f32.mrf.mxu0
    %v939 = vadd.f32 %v843, %v938
    %v940 = vpop.f32.mrf.mxu0
    %941 = vmatprep.mubr.bf16.mxu0 0
    %942 = vmatmul.mubr.bf16.gmra.mxu0 %v820
    %v943 = vpop.f32.mrf.mxu0
    %v944 = vadd.f32 %v843, %v943
    %v945 = vpop.f32.mrf.mxu0
    %v946 = vpop.f32.mrf.mxu0
    %v947 = vadd.f32 %v843, %v946
    %v948 = vpop.f32.mrf.mxu0
    %949 = vmatprep.mubr.bf16.mxu0 0
    %950 = vmatmul.mubr.bf16.gmra.mxu0 %v821
    %v951 = vpop.f32.mrf.mxu0
    %v952 = vadd.f32 %v843, %v951
    %v953 = vpop.f32.mrf.mxu0
    %v954 = vpop.f32.mrf.mxu0
    %v955 = vadd.f32 %v843, %v954
    %v956 = vpop.f32.mrf.mxu0
    %957 = vdwg.mxu0
    %958 = vst [vmem:[#allocation11] sm:$0xff] %v928
    %959 = vst [vmem:[#allocation11 + $0x8] sm:$0xff] %v931
    %960 = vst [vmem:[#allocation11 + $0x10] sm:$0xff] %v936
    %961 = vst [vmem:[#allocation11 + $0x18] sm:$0xff] %v939
    %962 = vst [vmem:[#allocation11 + $0x20] sm:$0xff] %v944
    %963 = vst [vmem:[#allocation11 + $0x28] sm:$0xff] %v947
    %964 = vst [vmem:[#allocation11 + $0x30] sm:$0xff] %v952
    %965 = vst [vmem:[#allocation11 + $0x38] sm:$0xff] %v955
    // Predicated region
    $region66: #{tpu_custom_call.1} parent=1 // pred_check
      _
    $region67: #{tpu_custom_call.1} parent=1 // pred_check_branch
      %967 = sbr.rel (0) target = $region69
    $region68: #{tpu_custom_call.1} parent=1 // pred_region
      %s969 = ssub.s32 1024, 1024
      %970 = vsyncadd [#allocation5], %s969
      %s971 = sshll.u32 [#allocation11], 4
      %s972 = int_to_ptr.vmem [resolvable:$true] %s971
      %977 = dma.vmem_to_hbm [thread:$0]  %s972, 1024, %s12, [#allocation5], 128, 128, 8
    $region69: #{tpu_custom_call.1} parent=1 // pred_fallthru
      _
    // Predicated region
    $region70: #{tpu_custom_call.1} parent=1 // pred_check
      _
    $region71: #{tpu_custom_call.1} parent=1 // pred_check_branch
      %979 = sbr.rel (0) target = $region73
    $region72: #{tpu_custom_call.1} parent=1 // pred_region
      %980 = dma.done [#allocation5], 1024
    $region73: #{tpu_custom_call.1} parent=1 // pred_fallthru
      _
    %981 = vsyncpa [#allocation4], 1
    %982 = vsyncpa [#allocation7], 1
    %983 = vsyncpa [#allocation10], 1
    %984 = vsyncpa [#allocation5], 1

</llo_original>
